<compile_context>
chip_gen: v6e
topology: v6e:2x2x1
jax: 0.10.0
libtpu: 0.0.40
codegen_flags: <defaults>
</compile_context>

<pallas_src>
import math
from functools import partial

import numpy as np
import jax
import jax.numpy as jnp
from jax.experimental import pallas as pl
from jax.experimental.pallas import tpu as pltpu


def _round_up(x: int, m: int) -> int:
    return ((x + m - 1) // m) * m


def time_embedding_kernel(t_ref, freqs_ref, w1_ref, b1_ref, w2_ref, b2_ref, out_ref):
    """Fused sinusoidal embedding + Linear -> Swish -> Linear for one batch tile."""
    t = t_ref[...].astype(jnp.float32)                      # [TM, 1]
    ang = t * freqs_ref[...]                                 # [TM, Dh_p]  (VPU)
    # [sin | cos] layout matches the de-interleaved / padded w1 from prepare_params.
    emb = jnp.concatenate([jnp.sin(ang), jnp.cos(ang)], axis=-1)   # EUP, [TM, 2*Dh_p]

    # Linear -> Swish -> Linear (bf16 operands on the MXU, f32 accumulation).
    h = jnp.dot(emb.astype(w1_ref.dtype), w1_ref[...],
                preferred_element_type=jnp.float32) + b1_ref[...]
    h = h * jax.nn.sigmoid(h)                                # Swish (EUP)
    out = jnp.dot(h.astype(w2_ref.dtype), w2_ref[...],
                  preferred_element_type=jnp.float32) + b2_ref[...]
    out_ref[...] = out.astype(out_ref.dtype)


def make_sinusoidal_table(T: int, d_model: int) -> jnp.ndarray:
    """Interleaved [sin0, cos0, sin1, cos1, ...] table (reference only)."""
    assert d_model % 2 == 0
    freqs = jnp.exp(-(jnp.arange(0, d_model, 2, dtype=jnp.float32)
                      / d_model * math.log(10000.0)))
    pos = jnp.arange(T, dtype=jnp.float32)
    ang = pos[:, None] * freqs[None, :]
    emb = jnp.stack([jnp.sin(ang), jnp.cos(ang)], axis=-1)
    return emb.reshape(T, d_model)


def prepare_params(w1, b1, w2, b2, d_model, *, compute_dtype=jnp.bfloat16):
    """One-time init.

    * builds the frequency row (zero-padded to a multiple of 128 lanes),
    * de-interleaves w1's rows ([sin0,cos0,...] -> [sin... | cos...]) and
      zero-pads so the padded cos(0)=1 columns contribute nothing,
    * pads all feature dims to lane-dense multiples of 128, casts weights to bf16.

    w1, w2 are stored pre-transposed as [in, out] (== W.T of nn.Linear).
    """
    assert d_model % 2 == 0
    d_half = d_model // 2
    dim = w1.shape[1]
    d_half_p = _round_up(d_half, 128)
    dim_p = _round_up(dim, 128)

    freqs = jnp.exp(-(jnp.arange(0, d_model, 2, dtype=jnp.float32)
                      / d_model * math.log(10000.0)))        # [d_half]
    freqs_p = jnp.pad(freqs, (0, d_half_p - d_half)).reshape(1, d_half_p)

    w1_sin = jnp.pad(w1[0::2], ((0, d_half_p - d_half), (0, dim_p - dim)))
    w1_cos = jnp.pad(w1[1::2], ((0, d_half_p - d_half), (0, dim_p - dim)))
    w1p = jnp.concatenate([w1_sin, w1_cos], axis=0).astype(compute_dtype)  # [2*Dh_p, dim_p]

    b1p = jnp.pad(b1.reshape(1, -1), ((0, 0), (0, dim_p - dim))).astype(jnp.float32)
    w2p = jnp.pad(w2, ((0, dim_p - dim), (0, dim_p - dim))).astype(compute_dtype)
    b2p = jnp.pad(b2.reshape(1, -1), ((0, 0), (0, dim_p - dim))).astype(jnp.float32)
    return freqs_p, w1p, b1p, w2p, b2p


@partial(jax.jit, static_argnames=("dim", "block_b", "out_dtype"))
def time_embedding(t, freqs_p, w1p, b1p, w2p, b2p, *, dim, block_b=512,
                   out_dtype=jnp.float32):
    """t: [B] int32 timesteps. Returns [B, dim] in out_dtype."""
    B = t.shape[0]
    d_half_p = freqs_p.shape[1]
    d2 = 2 * d_half_p
    dim_p = w1p.shape[1]

    # Batch tile: full batch if small; otherwise a multiple-of-8 sublane tile.
    tm = min(B, block_b)
    if B >= 16:
        # Guarantee >= 2 grid steps so the parallel batch axis shards across
        # both TensorCores on v7x (harmless on single-TC v5e/v6e).
        tm = min(tm, _round_up(-(-B // 2), 8))
    if tm != B:
        tm = max(8, (tm // 8) * 8)
    grid = (pl.cdiv(B, tm),)

    # VMEM budget: double-buffered streaming blocks + resident weights + f32
    # intermediates headroom; raised above the default scoped limit if needed.
    out_itemsize = np.dtype(out_dtype).itemsize
    est = (2 * (tm * 128 * 4                      # t tile (generous lane padding)
                + d_half_p * 4                    # freqs
                + 2 * dim_p * 4                   # b1 + b2
                + tm * dim_p * out_itemsize)      # output tile
           + 2 * d2 * dim_p * np.dtype(w1p.dtype).itemsize
           + 2 * dim_p * dim_p * np.dtype(w2p.dtype).itemsize
           + 4 * tm * (d2 + 2 * dim_p) * 4)       # f32 emb / h temporaries
    vmem_limit = min(64 << 20, max(32 << 20, int(est * 1.25) + (2 << 20)))

    # Weights / frequency row are VMEM-resident (constant index_map); for large
    # dim drop them to single buffering so big tiles still fit v7x's 64 MiB.
    resident_kwargs = {"pipeline_mode": pl.Buffered(1)} if dim_p >= 2048 else {}

    t2 = t.reshape(B, 1).astype(jnp.int32)

    out = pl.pallas_call(
        time_embedding_kernel,
        out_shape=jax.ShapeDtypeStruct((B, dim_p), out_dtype),
        grid=grid,
        in_specs=[
            pl.BlockSpec((tm, 1), lambda i: (i, 0)),                        # timesteps
            pl.BlockSpec((1, d_half_p), lambda i: (0, 0)),                  # freqs
            pl.BlockSpec((d2, dim_p), lambda i: (0, 0), **resident_kwargs), # w1
            pl.BlockSpec((1, dim_p), lambda i: (0, 0)),                     # b1
            pl.BlockSpec((dim_p, dim_p), lambda i: (0, 0), **resident_kwargs),  # w2
            pl.BlockSpec((1, dim_p), lambda i: (0, 0)),                     # b2
        ],
        out_specs=pl.BlockSpec((tm, dim_p), lambda i: (i, 0)),              # lane-dense
        compiler_params=pltpu.CompilerParams(
            dimension_semantics=("parallel",),
            vmem_limit_bytes=vmem_limit),
    )(t2, freqs_p, w1p, b1p, w2p, b2p)

    return out[:, :dim] if dim_p != dim else out


if __name__ == "__main__":
    # Small shapes consistent with the module: T diffusion steps, d_model, dim.
    T, d_model, dim = 16, 32, 64

    key = jax.random.PRNGKey(0)
    k_t1, k_t2, k_w1, k_b1, k_w2, k_b2 = jax.random.split(key, 6)

    # nn.Linear weights, stored pre-transposed as [in, out] (== W.T of nn.Linear).
    w1 = jax.random.normal(k_w1, (d_model, dim), jnp.float32) * 0.02
    b1 = jax.random.normal(k_b1, (dim,), jnp.float32) * 0.02
    w2 = jax.random.normal(k_w2, (dim, dim), jnp.float32) * 0.02
    b2 = jax.random.normal(k_b2, (dim,), jnp.float32) * 0.02

    freqs_p, w1p, b1p, w2p, b2p = prepare_params(w1, b1, w2, b2, d_model)

    # Pure-JAX f32 reference of the PyTorch forward (interleaved sinusoid table).
    emb_table = make_sinusoidal_table(T, d_model)

    def ref_fn(tt):
        x = emb_table[tt]
        h = x @ w1 + b1
        h = h * jax.nn.sigmoid(h)
        return h @ w2 + b2

    # Case 1: B=8  -> single tile (full-batch block).
    # Case 2: B=20 -> two tiles with a partial last block (non-divisible B).
    for k_t, B in ((k_t1, 8), (k_t2, 20)):
        t = jax.random.randint(k_t, (B,), 0, T, dtype=jnp.int32)
        out = jax.block_until_ready(
            time_embedding(t, freqs_p, w1p, b1p, w2p, b2p, dim=dim))
        ref = ref_fn(t)
        assert out.shape == (B, dim)
        # Weights run in bf16 on the MXU (f32 accumulation) -> bf16-level error.
        assert jnp.allclose(out, ref, atol=1e-2, rtol=5e-2), (
            B, float(jnp.max(jnp.abs(out - ref))))

    print("KERNEL_OK")
</pallas_src>

<mosaic_0001>
module attributes {stable_mosaic.version = 11 : i64} {
  func.func @time_embedding_kernel(%arg0: i32, %arg1: memref<8x1xi32, #tpu.memory_space<vmem>>, %arg2: memref<1x128xf32, #tpu.memory_space<vmem>>, %arg3: memref<256x128xbf16, #tpu.memory_space<vmem>>, %arg4: memref<1x128xf32, #tpu.memory_space<vmem>>, %arg5: memref<128x128xbf16, #tpu.memory_space<vmem>>, %arg6: memref<1x128xf32, #tpu.memory_space<vmem>>, %arg7: memref<8x128xf32, #tpu.memory_space<vmem>>) attributes {dimension_semantics = [#tpu.dimension_semantics<parallel>], iteration_bounds = array<i64: 1>, scalar_prefetch = 0 : i64, scratch_operands = 0 : i64, tpu.core_type = #tpu.core_type<tc>, window_params = [{transform_indices = @transform_0, window_bounds = array<i64: 8, 1>}, {pipeline_mode = #tpu.pipeline_mode<synchronous>, transform_indices = @transform_1, window_bounds = array<i64: 1, 128>}, {pipeline_mode = #tpu.pipeline_mode<synchronous>, transform_indices = @transform_2, window_bounds = array<i64: 256, 128>}, {pipeline_mode = #tpu.pipeline_mode<synchronous>, transform_indices = @transform_3, window_bounds = array<i64: 1, 128>}, {pipeline_mode = #tpu.pipeline_mode<synchronous>, transform_indices = @transform_4, window_bounds = array<i64: 128, 128>}, {pipeline_mode = #tpu.pipeline_mode<synchronous>, transform_indices = @transform_5, window_bounds = array<i64: 1, 128>}, {transform_indices = @transform_6, window_bounds = array<i64: 8, 128>}]} {
    %c0 = arith.constant 0 : index
    %c0_0 = arith.constant 0 : index
    %0 = vector.load %arg1[%c0, %c0_0] : memref<8x1xi32, #tpu.memory_space<vmem>>, vector<8x1xi32>
    %1 = arith.sitofp %0 : vector<8x1xi32> to vector<8x1xf32>
    %c0_1 = arith.constant 0 : index
    %c0_2 = arith.constant 0 : index
    %2 = vector.load %arg2[%c0_1, %c0_2] : memref<1x128xf32, #tpu.memory_space<vmem>>, vector<1x128xf32>
    %3 = vector.broadcast %1 : vector<8x1xf32> to vector<8x128xf32>
    %4 = vector.broadcast %2 : vector<1x128xf32> to vector<8x128xf32>
    %5 = arith.mulf %3, %4 : vector<8x128xf32>
    %6 = math.sin %5 : vector<8x128xf32>
    %7 = math.cos %5 : vector<8x128xf32>
    %8 = tpu.concatenate %6, %7 in 1 : vector<8x128xf32>, vector<8x128xf32> -> vector<8x256xf32>
    %9 = arith.truncf %8 : vector<8x256xf32> to vector<8x256xbf16>
    %c0_3 = arith.constant 0 : index
    %c0_4 = arith.constant 0 : index
    %10 = vector.load %arg3[%c0_3, %c0_4] : memref<256x128xbf16, #tpu.memory_space<vmem>>, vector<256x128xbf16>
    %cst = arith.constant dense<0.000000e+00> : vector<8x128xf32>
    %11 = tpu.matmul %9, %10, %cst {dimension_numbers = #tpu.dot_dimension_numbers<[1], [0], [0], [1], [0, 0, 1, 1], [], []>} : vector<8x256xbf16>, vector<256x128xbf16>, vector<8x128xf32> -> vector<8x128xf32>
    %c0_5 = arith.constant 0 : index
    %c0_6 = arith.constant 0 : index
    %12 = vector.load %arg4[%c0_5, %c0_6] : memref<1x128xf32, #tpu.memory_space<vmem>>, vector<1x128xf32>
    %13 = vector.broadcast %12 : vector<1x128xf32> to vector<8x128xf32>
    %14 = arith.addf %11, %13 : vector<8x128xf32>
    %15 = arith.negf %14 : vector<8x128xf32>
    %16 = math.exp %15 : vector<8x128xf32>
    %cst_7 = arith.constant 1.000000e+00 : f32
    %17 = vector.broadcast %cst_7 : f32 to vector<8x128xf32>
    %18 = arith.addf %17, %16 : vector<8x128xf32>
    %19 = arith.divf %17, %18 : vector<8x128xf32>
    %20 = arith.mulf %14, %19 : vector<8x128xf32>
    %21 = arith.truncf %20 : vector<8x128xf32> to vector<8x128xbf16>
    %c0_8 = arith.constant 0 : index
    %c0_9 = arith.constant 0 : index
    %22 = vector.load %arg5[%c0_8, %c0_9] : memref<128x128xbf16, #tpu.memory_space<vmem>>, vector<128x128xbf16>
    %cst_10 = arith.constant dense<0.000000e+00> : vector<8x128xf32>
    %23 = tpu.matmul %21, %22, %cst_10 {dimension_numbers = #tpu.dot_dimension_numbers<[1], [0], [0], [1], [0, 0, 1, 1], [], []>} : vector<8x128xbf16>, vector<128x128xbf16>, vector<8x128xf32> -> vector<8x128xf32>
    %c0_11 = arith.constant 0 : index
    %c0_12 = arith.constant 0 : index
    %24 = vector.load %arg6[%c0_11, %c0_12] : memref<1x128xf32, #tpu.memory_space<vmem>>, vector<1x128xf32>
    %25 = vector.broadcast %24 : vector<1x128xf32> to vector<8x128xf32>
    %26 = arith.addf %23, %25 : vector<8x128xf32>
    %c0_13 = arith.constant 0 : index
    %c0_14 = arith.constant 0 : index
    %27 = vector.load %arg7[%c0_13, %c0_14] : memref<8x128xf32, #tpu.memory_space<vmem>>, vector<8x128xf32>
    tpu.vector_store %arg7[%c0_13, %c0_14], %26 {strides = array<i32>} : memref<8x128xf32, #tpu.memory_space<vmem>>, vector<8x128xf32>,
    return
  }
  func.func @transform_0(%arg0: i32) -> (i32, i32) {
    %c0_i32 = arith.constant 0 : i32
    %c0_i32_0 = arith.constant 0 : i32
    return %arg0, %c0_i32 : i32, i32
  }
  func.func @transform_1(%arg0: i32) -> (i32, i32) {
    %c0_i32 = arith.constant 0 : i32
    %c0_i32_0 = arith.constant 0 : i32
    %c0_i32_1 = arith.constant 0 : i32
    return %c0_i32, %c0_i32_0 : i32, i32
  }
  func.func @transform_2(%arg0: i32) -> (i32, i32) {
    %c0_i32 = arith.constant 0 : i32
    %c0_i32_0 = arith.constant 0 : i32
    %c0_i32_1 = arith.constant 0 : i32
    return %c0_i32, %c0_i32_0 : i32, i32
  }
  func.func @transform_3(%arg0: i32) -> (i32, i32) {
    %c0_i32 = arith.constant 0 : i32
    %c0_i32_0 = arith.constant 0 : i32
    %c0_i32_1 = arith.constant 0 : i32
    return %c0_i32, %c0_i32_0 : i32, i32
  }
  func.func @transform_4(%arg0: i32) -> (i32, i32) {
    %c0_i32 = arith.constant 0 : i32
    %c0_i32_0 = arith.constant 0 : i32
    %c0_i32_1 = arith.constant 0 : i32
    return %c0_i32, %c0_i32_0 : i32, i32
  }
  func.func @transform_5(%arg0: i32) -> (i32, i32) {
    %c0_i32 = arith.constant 0 : i32
    %c0_i32_0 = arith.constant 0 : i32
    %c0_i32_1 = arith.constant 0 : i32
    return %c0_i32, %c0_i32_0 : i32, i32
  }
  func.func @transform_6(%arg0: i32) -> (i32, i32) {
    %c0_i32 = arith.constant 0 : i32
    %c0_i32_0 = arith.constant 0 : i32
    return %arg0, %c0_i32 : i32, i32
  }
}

</mosaic_0001>

<llo_original>
// kernel: time_embedding.1
$region0: #{time_embedding.1}
  #allocation0 [shape = 'u32[]', space=smem, size = 0x4, offset = 0x4, fixed_abs, tag = 'smem constant byte address 0x4 - core index']
  #allocation1 [shape = 'u32[144,128]{1,0:T(1,128)}', space=vmem, size = 0x12000, scoped, tag = 'internal scratch']
  %s0 = inlined_call_operand.vmem [shape: s32[8,1], index: 0, kind: input, shape index: {}]
  %s1 = inlined_call_operand.vmem [shape: f32[1,128], index: 1, kind: input, shape index: {}]
  %s2 = inlined_call_operand.hbm [shape: bf16[256,128], index: 2, kind: input, shape index: {}]
  %s3 = inlined_call_operand.vmem [shape: f32[1,128], index: 3, kind: input, shape index: {}]
  %s4 = inlined_call_operand.hbm [shape: bf16[128,128], index: 4, kind: input, shape index: {}]
  %s5 = inlined_call_operand.vmem [shape: f32[1,128], index: 5, kind: input, shape index: {}]
  %s6 = inlined_call_operand.hbm [shape: f32[8,128], index: 6, kind: output, shape index: {}]
  %s7 = sld [smem:[#allocation0]]
  $region42: #{time_embedding.1} parent=0
    _
  %s9 = ssub.s32 1, %s7
  %s10 = scalar_select 0, %s9, %s7
  $region1: #{time_embedding.1} parent=0
    #allocation2 [shape = 'u8[65536]{0}', space=vmem, size = 0x10000, scoped, tag = 'input window, operand 2, single buffered']
    #allocation3 [shape = 's32[1]{0}', space=sflag, size = 0x4, scoped, tag = 'scoped memory for time_embedding.1']
    #allocation4 [shape = 's32[1]{0}', space=sflag, size = 0x4, scoped, tag = 'scoped memory for time_embedding.1']
    #allocation5 [shape = 'u8[32768]{0}', space=vmem, size = 0x8000, scoped, tag = 'input window, operand 4, single buffered']
    #allocation6 [shape = 's32[1]{0}', space=sflag, size = 0x4, scoped, tag = 'scoped memory for time_embedding.1']
    #allocation7 [shape = 'u8[4096]{0}', space=vmem, size = 0x1000, scoped, tag = 'output window, operand 0, single buffered']
    %11 = vsyncpa [#allocation3], 0
    %12 = vsyncpa [#allocation6], 0
    %13 = vsyncpa [#allocation4], 0
    // Predicated region
    $region2: #{time_embedding.1} parent=1 // pred_check
      _
    $region3: #{time_embedding.1} parent=1 // pred_check_branch
      %15 = sbr.rel (0) target = $region5
    $region4: #{time_embedding.1} parent=1 // pred_region
      _
    $region5: #{time_embedding.1} parent=1 // pred_fallthru
      _
    // Predicated region
    $region6: #{time_embedding.1} parent=1 // pred_check
      _
    $region7: #{time_embedding.1} parent=1 // pred_check_branch
      %17 = sbr.rel (0) target = $region9
    $region8: #{time_embedding.1} parent=1 // pred_region
      _
    $region9: #{time_embedding.1} parent=1 // pred_fallthru
      _
    // Predicated region
    $region10: #{time_embedding.1} parent=1 // pred_check
      _
    $region11: #{time_embedding.1} parent=1 // pred_check_branch
      %19 = sbr.rel (0) target = $region13
    $region12: #{time_embedding.1} parent=1 // pred_region
      %s21 = ssub.s32 2048, 2048
      %22 = vsyncadd [#allocation3], %s21
      %s23 = sshll.u32 [#allocation2], 4
      %s24 = int_to_ptr.vmem [resolvable:$true] %s23
      %29 = dma.hbm_to_vmem [thread:$0]  %s2, 2048, %s24, [#allocation3], 64, 64, 4
    $region13: #{time_embedding.1} parent=1 // pred_fallthru
      _
    // Predicated region
    $region14: #{time_embedding.1} parent=1 // pred_check
      _
    $region15: #{time_embedding.1} parent=1 // pred_check_branch
      %31 = sbr.rel (0) target = $region17
    $region16: #{time_embedding.1} parent=1 // pred_region
      _
    $region17: #{time_embedding.1} parent=1 // pred_fallthru
      _
    // Predicated region
    $region18: #{time_embedding.1} parent=1 // pred_check
      _
    $region19: #{time_embedding.1} parent=1 // pred_check_branch
      %33 = sbr.rel (0) target = $region21
    $region20: #{time_embedding.1} parent=1 // pred_region
      %s35 = ssub.s32 1024, 1024
      %36 = vsyncadd [#allocation6], %s35
      %s37 = sshll.u32 [#allocation5], 4
      %s38 = int_to_ptr.vmem [resolvable:$true] %s37
      %43 = dma.hbm_to_vmem [thread:$0]  %s4, 1024, %s38, [#allocation6], 64, 64, 4
    $region21: #{time_embedding.1} parent=1 // pred_fallthru
      _
    // Predicated region
    $region22: #{time_embedding.1} parent=1 // pred_check
      _
    $region23: #{time_embedding.1} parent=1 // pred_check_branch
      %45 = sbr.rel (0) target = $region25
    $region24: #{time_embedding.1} parent=1 // pred_region
      _
    $region25: #{time_embedding.1} parent=1 // pred_fallthru
      _
    // Predicated region
    $region26: #{time_embedding.1} parent=1 // pred_check
      _
    $region27: #{time_embedding.1} parent=1 // pred_check_branch
      %47 = sbr.rel (0) target = $region29
    $region28: #{time_embedding.1} parent=1 // pred_region
      %48 = dma.done [#allocation3], 2048
    $region29: #{time_embedding.1} parent=1 // pred_fallthru
      _
    // Predicated region
    $region30: #{time_embedding.1} parent=1 // pred_check
      _
    $region31: #{time_embedding.1} parent=1 // pred_check_branch
      %50 = sbr.rel (0) target = $region33
    $region32: #{time_embedding.1} parent=1 // pred_region
      %51 = dma.done [#allocation6], 1024
    $region33: #{time_embedding.1} parent=1 // pred_fallthru
      _
    %v53 = vld [vmem:[%s0] sm:$0xff]
    %v54 = vcvt.s32.f32 %v53
    %v55 = vld [vmem:[%s1] sm:$0x1]
    %57 = vset.pattern.permute.xlu0 0
    %58 = vperm.xlu0 %57, %v54
    %v59 = vpop.permute.xlu0 %58
    %v62 = vlaneseq
    %v63 = vshrl.u32 %v62, 7
    %v64 = vsub.s32 0, %v63
    %v65 = vrot.slane %v55, %v64
    %v67 = vmul.f32 %v59, %v65
    %v68 = vand.u32 2147483647, %v67
    %vm69 = vcmp.le.f32.partialorder %v68, 0.7853982
    %vm70 = vcmp.lt.s32.totalorder %v67, 0
    %v71 = vand.u32 %v67, 2139095040
    %v72 = vshrl.u32 %v71, 23
    %v73 = vsub.s32 %v72, 127
    %v74 = vand.u32 2147483647, %v67
    %v75 = vand.u32 %v74, 8388607
    %v76 = vor.u32 %v75, 8388608
    %v77 = vsub.s32 0, %v76
    %v78 = vadd.s32 %v73, 1
    %vm79 = vcmp.gt.s32.totalorder %v78, 0
    %v80 = vsel %vm79, %v78, 0
    %v81 = vshrl.u32 %v80, 5
    %v82 = vand.u32 %v80, 31
    %v83 = vsub.s32 32, %v82
    %v84 = vshrl.u32 683565275, %v83
    %v85 = vshll.u32 683565275, %v82
    %v86 = vshrl.u32 2475754826, %v83
    %v87 = vor.u32 %v85, %v86
    %v88 = vshll.u32 2475754826, %v82
    %v89 = vshrl.u32 2131351028, %v83
    %v90 = vor.u32 %v88, %v89
    %v91 = vshll.u32 2131351028, %v82
    %v92 = vshrl.u32 2102212464, %v83
    %v93 = vor.u32 %v91, %v92
    %v94 = vshll.u32 2102212464, %v82
    %v95 = vshrl.u32 920167782, %v83
    %v96 = vor.u32 %v94, %v95
    %v97 = vshll.u32 920167782, %v82
    %v98 = vshrl.u32 1326507024, %v83
    %v99 = vor.u32 %v97, %v98
    %vm100 = vcmp.lt.s32.totalorder %v81, 1
    %vm101 = vcmp.lt.s32.totalorder %v81, 2
    %vm102 = vcmp.lt.s32.totalorder %v81, 3
    %vm103 = vcmp.lt.s32.totalorder %v81, 4
    %v104 = vsel %vm100, %v84, %v87
    %v105 = vsel %vm103, %v93, 2102212464
    %v106 = vsel %vm102, %v90, %v105
    %v107 = vsel %vm101, %v104, %v106
    %v108 = vsel %vm100, %v87, %v90
    %v109 = vsel %vm103, %v96, 920167782
    %v110 = vsel %vm102, %v93, %v109
    %v111 = vsel %vm101, %v108, %v110
    %v112 = vsel %vm100, %v90, %v93
    %v113 = vsel %vm103, %v99, 1326507024
    %v114 = vsel %vm102, %v96, %v113
    %v115 = vsel %vm101, %v112, %v114
    %v116 = vshll.u32 %v76, 8
    %v117 = vmul.u32.u64.compose %v116, %v115
    %v118 = vextract.low.u32 %v117
    %v119 = vextract.high.u32 %v117
    %v120 = vmul.u32.u64.compose %v116, %v111
    %v121 = vextract.low.u32 %v120
    %v122 = vextract.high.u32 %v120
    %v123 = vmul.u32 %v116, %v107
    %v124 = vadd.s32 %v119, %v121
    %vm125 = vc.u32 %v119, %v121
    %v126 = vadd.s32 %v122, 1
    %v127 = vsel %vm125, %v126, %v122
    %v128 = vadd.s32 %v123, %v127
    %v129 = vadd.s32 %v128, 536870912
    %v130 = vshrl.u32 %v129, 30
    %v131 = vshll.u32 %v130, 30
    %v132 = vsub.s32 %v128, %v131
    %vm133 = vcmp.lt.s32.totalorder %v132, 0
    %v134 = vsub.s32 0, %v132
    %v135 = vsel %vm133, %v134, %v132
    %v136 = vclz %v135
    %v137 = vsub.s32 %v136, 2
    %vm138 = vcmp.gt.s32.totalorder 0, %v137
    %v139 = vsel %vm138, 0, %v137
    %v140 = vsub.s32 32, %v139
    %v141 = vshll.u32 %v132, %v139
    %v142 = vshrl.u32 %v124, %v140
    %v143 = vor.u32 %v141, %v142
    %v144 = vsub.s32 4294967266, %v139
    %v145 = vadd.s32 %v144, 127
    %v146 = vshll.u32 %v145, 23
    %v147 = vor.u32 4788187, %v146
    %v148 = vand.u32 2147483647, %v147
    %v150 = vcvt.s32.f32 %v143
    %v151 = vmul.f32 %v150, %v148
    %v152 = vxor.u32 %v151, 2147483648
    %v153 = vsel %vm70, %v152, %v151
    %v154 = vsub.s32 4, %v130
    %v155 = vsel %vm70, %v154, %v130
    %v156 = vsel %vm69, %v67, %v153
    %v157 = vsel %vm69, 0, %v155
    %v158 = vcosq.f32.pop %v156
    %v159 = vsinq.f32.pop %v156
    %vm160 = vweird.f32 %v67
    %v161 = vadd.s32 %v157, 3
    %v162 = vand.u32 %v161, 3
    %vm163 = vcmp.lt.s32.totalorder %v162, 2
    %vm164 = vcmp.eq.s32.totalorder %v162, 0
    %v165 = vxor.u32 %v159, 2147483648
    %v166 = vsel %vm164, %v158, %v165
    %vm167 = vcmp.eq.s32.totalorder %v162, 2
    %v168 = vxor.u32 %v158, 2147483648
    %v169 = vsel %vm167, %v168, %v159
    %v170 = vsel %vm163, %v166, %v169
    %v171 = vsel %vm160, nan, %v170
    %v172 = vand.u32 2147483647, %v67
    %vm173 = vcmp.le.f32.partialorder %v172, 0.7853982
    %vm174 = vcmp.lt.s32.totalorder %v67, 0
    %v175 = vand.u32 %v67, 2139095040
    %v176 = vshrl.u32 %v175, 23
    %v177 = vsub.s32 %v176, 127
    %v178 = vand.u32 2147483647, %v67
    %v179 = vand.u32 %v178, 8388607
    %v180 = vor.u32 %v179, 8388608
    %v181 = vsub.s32 0, %v180
    %v182 = vadd.s32 %v177, 1
    %vm183 = vcmp.gt.s32.totalorder %v182, 0
    %v184 = vsel %vm183, %v182, 0
    %v185 = vshrl.u32 %v184, 5
    %v186 = vand.u32 %v184, 31
    %v187 = vsub.s32 32, %v186
    %v188 = vshrl.u32 683565275, %v187
    %v189 = vshll.u32 683565275, %v186
    %v190 = vshrl.u32 2475754826, %v187
    %v191 = vor.u32 %v189, %v190
    %v192 = vshll.u32 2475754826, %v186
    %v193 = vshrl.u32 2131351028, %v187
    %v194 = vor.u32 %v192, %v193
    %v195 = vshll.u32 2131351028, %v186
    %v196 = vshrl.u32 2102212464, %v187
    %v197 = vor.u32 %v195, %v196
    %v198 = vshll.u32 2102212464, %v186
    %v199 = vshrl.u32 920167782, %v187
    %v200 = vor.u32 %v198, %v199
    %v201 = vshll.u32 920167782, %v186
    %v202 = vshrl.u32 1326507024, %v187
    %v203 = vor.u32 %v201, %v202
    %vm204 = vcmp.lt.s32.totalorder %v185, 1
    %vm205 = vcmp.lt.s32.totalorder %v185, 2
    %vm206 = vcmp.lt.s32.totalorder %v185, 3
    %vm207 = vcmp.lt.s32.totalorder %v185, 4
    %v208 = vsel %vm204, %v188, %v191
    %v209 = vsel %vm207, %v197, 2102212464
    %v210 = vsel %vm206, %v194, %v209
    %v211 = vsel %vm205, %v208, %v210
    %v212 = vsel %vm204, %v191, %v194
    %v213 = vsel %vm207, %v200, 920167782
    %v214 = vsel %vm206, %v197, %v213
    %v215 = vsel %vm205, %v212, %v214
    %v216 = vsel %vm204, %v194, %v197
    %v217 = vsel %vm207, %v203, 1326507024
    %v218 = vsel %vm206, %v200, %v217
    %v219 = vsel %vm205, %v216, %v218
    %v220 = vshll.u32 %v180, 8
    %v221 = vmul.u32.u64.compose %v220, %v219
    %v222 = vextract.low.u32 %v221
    %v223 = vextract.high.u32 %v221
    %v224 = vmul.u32.u64.compose %v220, %v215
    %v225 = vextract.low.u32 %v224
    %v226 = vextract.high.u32 %v224
    %v227 = vmul.u32 %v220, %v211
    %v228 = vadd.s32 %v223, %v225
    %vm229 = vc.u32 %v223, %v225
    %v230 = vadd.s32 %v226, 1
    %v231 = vsel %vm229, %v230, %v226
    %v232 = vadd.s32 %v227, %v231
    %v233 = vadd.s32 %v232, 536870912
    %v234 = vshrl.u32 %v233, 30
    %v235 = vshll.u32 %v234, 30
    %v236 = vsub.s32 %v232, %v235
    %vm237 = vcmp.lt.s32.totalorder %v236, 0
    %v238 = vsub.s32 0, %v236
    %v239 = vsel %vm237, %v238, %v236
    %v240 = vclz %v239
    %v241 = vsub.s32 %v240, 2
    %vm242 = vcmp.gt.s32.totalorder 0, %v241
    %v243 = vsel %vm242, 0, %v241
    %v244 = vsub.s32 32, %v243
    %v245 = vshll.u32 %v236, %v243
    %v246 = vshrl.u32 %v228, %v244
    %v247 = vor.u32 %v245, %v246
    %v248 = vsub.s32 4294967266, %v243
    %v249 = vadd.s32 %v248, 127
    %v250 = vshll.u32 %v249, 23
    %v251 = vor.u32 4788187, %v250
    %v252 = vand.u32 2147483647, %v251
    %v254 = vcvt.s32.f32 %v247
    %v255 = vmul.f32 %v254, %v252
    %v256 = vxor.u32 %v255, 2147483648
    %v257 = vsel %vm174, %v256, %v255
    %v258 = vsub.s32 4, %v234
    %v259 = vsel %vm174, %v258, %v234
    %v260 = vsel %vm173, %v67, %v257
    %v261 = vsel %vm173, 0, %v259
    %v262 = vcosq.f32.pop %v260
    %v263 = vsinq.f32.pop %v260
    %vm264 = vweird.f32 %v67
    %v265 = vand.u32 %v261, 3
    %vm266 = vcmp.lt.s32.totalorder %v265, 2
    %vm267 = vcmp.eq.s32.totalorder %v265, 0
    %v268 = vxor.u32 %v263, 2147483648
    %v269 = vsel %vm267, %v262, %v268
    %vm270 = vcmp.eq.s32.totalorder %v265, 2
    %v271 = vxor.u32 %v262, 2147483648
    %v272 = vsel %vm270, %v271, %v263
    %v273 = vsel %vm266, %v269, %v272
    %v274 = vsel %vm264, nan, %v273
    %v275 = vpack.c.bf16 %v171, %v171
    %v276 = vpack.c.bf16 %v274, %v274
    %v277 = vld [vmem:[#allocation2] sm:$0xf]
    %v278 = vld [vmem:[#allocation2 + $0x4] sm:$0xf]
    %v279 = vld [vmem:[#allocation2 + $0x8] sm:$0xf]
    %v280 = vld [vmem:[#allocation2 + $0xc] sm:$0xf]
    %v281 = vld [vmem:[#allocation2 + $0x10] sm:$0xf]
    %v282 = vld [vmem:[#allocation2 + $0x14] sm:$0xf]
    %v283 = vld [vmem:[#allocation2 + $0x18] sm:$0xf]
    %v284 = vld [vmem:[#allocation2 + $0x1c] sm:$0xf]
    %v285 = vld [vmem:[#allocation2 + $0x20] sm:$0xf]
    %v286 = vld [vmem:[#allocation2 + $0x24] sm:$0xf]
    %v287 = vld [vmem:[#allocation2 + $0x28] sm:$0xf]
    %v288 = vld [vmem:[#allocation2 + $0x2c] sm:$0xf]
    %v289 = vld [vmem:[#allocation2 + $0x30] sm:$0xf]
    %v290 = vld [vmem:[#allocation2 + $0x34] sm:$0xf]
    %v291 = vld [vmem:[#allocation2 + $0x38] sm:$0xf]
    %v292 = vld [vmem:[#allocation2 + $0x3c] sm:$0xf]
    %v293 = vld [vmem:[#allocation2 + $0x40] sm:$0xf]
    %v294 = vld [vmem:[#allocation2 + $0x44] sm:$0xf]
    %v295 = vld [vmem:[#allocation2 + $0x48] sm:$0xf]
    %v296 = vld [vmem:[#allocation2 + $0x4c] sm:$0xf]
    %v297 = vld [vmem:[#allocation2 + $0x50] sm:$0xf]
    %v298 = vld [vmem:[#allocation2 + $0x54] sm:$0xf]
    %v299 = vld [vmem:[#allocation2 + $0x58] sm:$0xf]
    %v300 = vld [vmem:[#allocation2 + $0x5c] sm:$0xf]
    %v301 = vld [vmem:[#allocation2 + $0x60] sm:$0xf]
    %v302 = vld [vmem:[#allocation2 + $0x64] sm:$0xf]
    %v303 = vld [vmem:[#allocation2 + $0x68] sm:$0xf]
    %v304 = vld [vmem:[#allocation2 + $0x6c] sm:$0xf]
    %v305 = vld [vmem:[#allocation2 + $0x70] sm:$0xf]
    %v306 = vld [vmem:[#allocation2 + $0x74] sm:$0xf]
    %v307 = vld [vmem:[#allocation2 + $0x78] sm:$0xf]
    %v308 = vld [vmem:[#allocation2 + $0x7c] sm:$0xf]
    %v309 = vld [vmem:[%s3] sm:$0x1]
    %v311 = vlaneseq
    %v312 = vshrl.u32 %v311, 7
    %v313 = vsub.s32 0, %v312
    %v314 = vrot.slane %v309, %v313
    %v348 = vunpack.c.l.b16 %v277
    %v349 = vunpack.c.l.b16 %v278
    %v350 = vunpack.c.l.b16 %v279
    %v351 = vunpack.c.l.b16 %v280
    %v352 = vunpack.c.l.b16 %v281
    %v353 = vunpack.c.l.b16 %v282
    %v354 = vunpack.c.l.b16 %v283
    %v355 = vunpack.c.l.b16 %v284
    %v356 = vunpack.c.l.b16 %v285
    %v357 = vunpack.c.l.b16 %v286
    %v358 = vunpack.c.l.b16 %v287
    %v359 = vunpack.c.l.b16 %v288
    %v360 = vunpack.c.l.b16 %v289
    %v361 = vunpack.c.l.b16 %v290
    %v362 = vunpack.c.l.b16 %v291
    %v363 = vunpack.c.l.b16 %v292
    %v364 = vunpack.c.l.b16 %v293
    %v365 = vunpack.c.l.b16 %v294
    %v366 = vunpack.c.l.b16 %v295
    %v367 = vunpack.c.l.b16 %v296
    %v368 = vunpack.c.l.b16 %v297
    %v369 = vunpack.c.l.b16 %v298
    %v370 = vunpack.c.l.b16 %v299
    %v371 = vunpack.c.l.b16 %v300
    %v372 = vunpack.c.l.b16 %v301
    %v373 = vunpack.c.l.b16 %v302
    %v374 = vunpack.c.l.b16 %v303
    %v375 = vunpack.c.l.b16 %v304
    %v376 = vunpack.c.l.b16 %v305
    %v377 = vunpack.c.l.b16 %v306
    %v378 = vunpack.c.l.b16 %v307
    %v379 = vunpack.c.l.b16 %v308
    %v380 = vpack.c.b16 %v349, %v348
    %v381 = vpack.c.b16 %v351, %v350
    %v382 = vpack.c.b16 %v353, %v352
    %v383 = vpack.c.b16 %v355, %v354
    %v384 = vpack.c.b16 %v357, %v356
    %v385 = vpack.c.b16 %v359, %v358
    %v386 = vpack.c.b16 %v361, %v360
    %v387 = vpack.c.b16 %v363, %v362
    %v388 = vpack.c.b16 %v365, %v364
    %v389 = vpack.c.b16 %v367, %v366
    %v390 = vpack.c.b16 %v369, %v368
    %v391 = vpack.c.b16 %v371, %v370
    %v392 = vpack.c.b16 %v373, %v372
    %v393 = vpack.c.b16 %v375, %v374
    %v394 = vpack.c.b16 %v377, %v376
    %v395 = vpack.c.b16 %v379, %v378
    %412 = vmatprep.subr.bf16.mxu0 0
    %413 = vmatpush1.bf16.msra.mxu0 %v387
    %414 = vmatprep.subr.bf16.mxu0 0
    %415 = vmatpush1.bf16.msra.mxu0 %v386
    %416 = vmatprep.subr.bf16.mxu0 0
    %417 = vmatpush1.bf16.msra.mxu0 %v385
    %418 = vmatprep.subr.bf16.mxu0 0
    %419 = vmatpush1.bf16.msra.mxu0 %v384
    %420 = vmatprep.subr.bf16.mxu0 0
    %421 = vmatpush1.bf16.msra.mxu0 %v383
    %422 = vmatprep.subr.bf16.mxu0 0
    %423 = vmatpush1.bf16.msra.mxu0 %v382
    %424 = vmatprep.subr.bf16.mxu0 0
    %425 = vmatpush1.bf16.msra.mxu0 %v381
    %426 = vmatprep.subr.bf16.mxu0 0
    %427 = vmatpush1.bf16.msra.mxu0 %v380
    %428 = vmatprep.subr.bf16.mxu0 0
    %429 = vmatpush2.bf16.msra.mxu0 %v395
    %430 = vmatprep.subr.bf16.mxu0 0
    %431 = vmatpush2.bf16.msra.mxu0 %v394
    %432 = vmatprep.subr.bf16.mxu0 0
    %433 = vmatpush2.bf16.msra.mxu0 %v393
    %434 = vmatprep.subr.bf16.mxu0 0
    %435 = vmatpush2.bf16.msra.mxu0 %v392
    %436 = vmatprep.subr.bf16.mxu0 0
    %437 = vmatpush2.bf16.msra.mxu0 %v391
    %438 = vmatprep.subr.bf16.mxu0 0
    %439 = vmatpush2.bf16.msra.mxu0 %v390
    %440 = vmatprep.subr.bf16.mxu0 0
    %441 = vmatpush2.bf16.msra.mxu0 %v389
    %442 = vmatprep.subr.bf16.mxu0 0
    %443 = vmatpush2.bf16.msra.mxu0 %v388
    %444 = vmatprep.mubr.bf16.mxu0 %v276
    %445 = vmatmul.mubr.bf16.gmra.mxu0 %v275
    %v446 = vpop.f32.mrf.mxu0
    %v447 = vadd.f32 %v314, %v446
    %v448 = vpop.f32.mrf.mxu0
    %v449 = vpop.f32.mrf.mxu0
    %v450 = vpop.f32.mrf.mxu0
    %451 = vdwg.mxu0
    %v452 = vxor.u32 %v447, 2147483648
    %v453 = vmul.f32 %v452, 1.442695
    %v454 = vpow.pop %v453
    %v455 = vadd.f32 %v454, 1.0
    %v456 = vrcp.pop %v455
    %v457 = vmul.f32 1.0, %v456
    %v458 = vmul.f32 %v447, %v457
    %v459 = vpack.c.bf16 %v458, %v458
    %v460 = vld [vmem:[#allocation5] sm:$0xf]
    %v461 = vld [vmem:[#allocation5 + $0x4] sm:$0xf]
    %v462 = vld [vmem:[#allocation5 + $0x8] sm:$0xf]
    %v463 = vld [vmem:[#allocation5 + $0xc] sm:$0xf]
    %v464 = vld [vmem:[#allocation5 + $0x10] sm:$0xf]
    %v465 = vld [vmem:[#allocation5 + $0x14] sm:$0xf]
    %v466 = vld [vmem:[#allocation5 + $0x18] sm:$0xf]
    %v467 = vld [vmem:[#allocation5 + $0x1c] sm:$0xf]
    %v468 = vld [vmem:[#allocation5 + $0x20] sm:$0xf]
    %v469 = vld [vmem:[#allocation5 + $0x24] sm:$0xf]
    %v470 = vld [vmem:[#allocation5 + $0x28] sm:$0xf]
    %v471 = vld [vmem:[#allocation5 + $0x2c] sm:$0xf]
    %v472 = vld [vmem:[#allocation5 + $0x30] sm:$0xf]
    %v473 = vld [vmem:[#allocation5 + $0x34] sm:$0xf]
    %v474 = vld [vmem:[#allocation5 + $0x38] sm:$0xf]
    %v475 = vld [vmem:[#allocation5 + $0x3c] sm:$0xf]
    %v476 = vld [vmem:[%s5] sm:$0x1]
    %v478 = vlaneseq
    %v479 = vshrl.u32 %v478, 7
    %v480 = vsub.s32 0, %v479
    %v481 = vrot.slane %v476, %v480
    %v499 = vunpack.c.l.b16 %v460
    %v500 = vunpack.c.l.b16 %v461
    %v501 = vunpack.c.l.b16 %v462
    %v502 = vunpack.c.l.b16 %v463
    %v503 = vunpack.c.l.b16 %v464
    %v504 = vunpack.c.l.b16 %v465
    %v505 = vunpack.c.l.b16 %v466
    %v506 = vunpack.c.l.b16 %v467
    %v507 = vunpack.c.l.b16 %v468
    %v508 = vunpack.c.l.b16 %v469
    %v509 = vunpack.c.l.b16 %v470
    %v510 = vunpack.c.l.b16 %v471
    %v511 = vunpack.c.l.b16 %v472
    %v512 = vunpack.c.l.b16 %v473
    %v513 = vunpack.c.l.b16 %v474
    %v514 = vunpack.c.l.b16 %v475
    %v515 = vpack.c.b16 %v500, %v499
    %v516 = vpack.c.b16 %v502, %v501
    %v517 = vpack.c.b16 %v504, %v503
    %v518 = vpack.c.b16 %v506, %v505
    %v519 = vpack.c.b16 %v508, %v507
    %v520 = vpack.c.b16 %v510, %v509
    %v521 = vpack.c.b16 %v512, %v511
    %v522 = vpack.c.b16 %v514, %v513
    %531 = vmatprep.subr.bf16.mxu0 0
    %532 = vmatpush1.bf16.msra.mxu0 %v522
    %533 = vmatprep.subr.bf16.mxu0 0
    %534 = vmatpush1.bf16.msra.mxu0 %v521
    %535 = vmatprep.subr.bf16.mxu0 0
    %536 = vmatpush1.bf16.msra.mxu0 %v520
    %537 = vmatprep.subr.bf16.mxu0 0
    %538 = vmatpush1.bf16.msra.mxu0 %v519
    %539 = vmatprep.subr.bf16.mxu0 0
    %540 = vmatpush1.bf16.msra.mxu0 %v518
    %541 = vmatprep.subr.bf16.mxu0 0
    %542 = vmatpush1.bf16.msra.mxu0 %v517
    %543 = vmatprep.subr.bf16.mxu0 0
    %544 = vmatpush1.bf16.msra.mxu0 %v516
    %545 = vmatprep.subr.bf16.mxu0 0
    %546 = vmatpush1.bf16.msra.mxu0 %v515
    %547 = vmatprep.subr.bf16.mxu0 0
    %548 = vmatpush2.bf16.msra.mxu0 0
    %549 = vmatprep.subr.bf16.mxu0 0
    %550 = vmatpush2.bf16.msra.mxu0 0
    %551 = vmatprep.subr.bf16.mxu0 0
    %552 = vmatpush2.bf16.msra.mxu0 0
    %553 = vmatprep.subr.bf16.mxu0 0
    %554 = vmatpush2.bf16.msra.mxu0 0
    %555 = vmatprep.subr.bf16.mxu0 0
    %556 = vmatpush2.bf16.msra.mxu0 0
    %557 = vmatprep.subr.bf16.mxu0 0
    %558 = vmatpush2.bf16.msra.mxu0 0
    %559 = vmatprep.subr.bf16.mxu0 0
    %560 = vmatpush2.bf16.msra.mxu0 0
    %561 = vmatprep.subr.bf16.mxu0 0
    %562 = vmatpush2.bf16.msra.mxu0 0
    %563 = vmatprep.mubr.bf16.mxu0 0
    %564 = vmatmul.mubr.bf16.gmra.mxu0 %v459
    %v565 = vpop.f32.mrf.mxu0
    %v566 = vadd.f32 %v481, %v565
    %v567 = vpop.f32.mrf.mxu0
    %v568 = vpop.f32.mrf.mxu0
    %v569 = vpop.f32.mrf.mxu0
    %570 = vdwg.mxu0
    %571 = vst [vmem:[#allocation7] sm:$0xff] %v566
    // Predicated region
    $region34: #{time_embedding.1} parent=1 // pred_check
      _
    $region35: #{time_embedding.1} parent=1 // pred_check_branch
      %573 = sbr.rel (0) target = $region37
    $region36: #{time_embedding.1} parent=1 // pred_region
      %s575 = ssub.s32 128, 128
      %576 = vsyncadd [#allocation4], %s575
      %s578 = sshll.u32 [#allocation7], 4
      %s579 = int_to_ptr.vmem [resolvable:$true] %s578
      %581 = dma.vmem_to_hbm [thread:$0]  %s579, 128, %s6, [#allocation4]
    $region37: #{time_embedding.1} parent=1 // pred_fallthru
      _
    // Predicated region
    $region38: #{time_embedding.1} parent=1 // pred_check
      _
    $region39: #{time_embedding.1} parent=1 // pred_check_branch
      %583 = sbr.rel (0) target = $region41
    $region40: #{time_embedding.1} parent=1 // pred_region
      %584 = dma.done [#allocation4], 128
    $region41: #{time_embedding.1} parent=1 // pred_fallthru
      _
    %585 = vsyncpa [#allocation3], 1
    %586 = vsyncpa [#allocation6], 1
    %587 = vsyncpa [#allocation4], 1

</llo_original>
